<compile_context>
chip_gen: v7x
topology: tpu7x:2x2x1
jax: 0.10.0
libtpu: 0.0.40
codegen_flags: <defaults>
</compile_context>

<pallas_src>
import functools
import math

import jax
import jax.numpy as jnp
from jax.experimental import pallas as pl
from jax.experimental.pallas import tpu as pltpu

_NEG_INF = -1e30                      # finite "minus infinity" (NaN-safe masking)
_VMEM_LIMIT = 48 * 1024 * 1024        # > default scoped limit on all gens, < v7x 64 MiB


def _pick_tile(n, target):
    """Largest divisor of n that is <= target and sublane-friendly (mult of 8 or == n)."""
    t = min(target, n)
    for cand in range(t, 0, -1):
        if n % cand == 0 and (cand % 8 == 0 or cand == n):
            return cand
    return n


# ---------------------------------------------------------------------------
# Kernel 1: fused QKV projection  qkv = x @ W_qkv + b_qkv
# One lane-dense (tm, C) @ (C, 3C) MXU matmul per row tile.
# ---------------------------------------------------------------------------
def _qkv_proj_kernel(x_ref, w_ref, b_ref, o_ref):
    acc = jnp.dot(x_ref[...], w_ref[...], preferred_element_type=jnp.float32)
    o_ref[...] = (acc + b_ref[...].astype(jnp.float32)).astype(o_ref.dtype)


# ---------------------------------------------------------------------------
# Kernel 2: flash attention over projected q/k/v + fused output projection.
# Grid = (B, n_pairs) where n_pairs enumerates lower-triangular (qi, ki) tile
# pairs (ki ascending within each qi, so the diagonal tile is visited last).
# ---------------------------------------------------------------------------
def _flash_attn_kernel(qi_tbl_ref, ki_tbl_ref,           # scalar-prefetched (SMEM)
                       q_ref, k_ref, v_ref, wp_ref, bp_ref,
                       o_ref,
                       m_scr, l_scr, acc_scr,
                       *, scale: float, blk: int):
    t = pl.program_id(1)
    qi = qi_tbl_ref[t]
    ki = ki_tbl_ref[t]

    @pl.when(ki == 0)
    def _init():
        m_scr[...] = jnp.full(m_scr.shape, _NEG_INF, m_scr.dtype)
        l_scr[...] = jnp.zeros(l_scr.shape, l_scr.dtype)
        acc_scr[...] = jnp.zeros(acc_scr.shape, acc_scr.dtype)

    q = q_ref[0]                                   # (H, blk, hd), native dtype
    k = k_ref[0]                                   # (H, blk, hd)
    v = v_ref[0]                                   # (H, blk, hd)

    # Scores for this (q-tile, kv-tile): (H, blk, blk), f32 accumulation on the MXU.
    s = jax.lax.dot_general(
        q, k, (((2,), (2,)), ((0,), (0,))),
        preferred_element_type=jnp.float32) * scale

    def _accumulate(s_masked):
        m_prev = m_scr[...]
        m_new = jnp.maximum(m_prev, jnp.max(s_masked, axis=-1, keepdims=True))
        alpha = jnp.exp(m_prev - m_new)
        p = jnp.exp(s_masked - m_new)
        l_scr[...] = alpha * l_scr[...] + jnp.sum(p, axis=-1, keepdims=True)
        acc_scr[...] = alpha * acc_scr[...] + jax.lax.dot_general(
            p.astype(v.dtype), v, (((2,), (1,)), ((0,), (0,))),
            preferred_element_type=jnp.float32)
        m_scr[...] = m_new

    # Interior tiles (ki < qi) lie fully below the causal diagonal: no mask, no iota.
    @pl.when(ki < qi)
    def _interior():
        _accumulate(s)

    # Only the diagonal tile (ki == qi, equal tile sizes) needs the causal mask; it is
    # also the last KV tile visited for this query tile, so finalize here as well.
    @pl.when(ki == qi)
    def _diag_and_finalize():
        row = jax.lax.broadcasted_iota(jnp.int32, (blk, blk), 0)
        col = jax.lax.broadcasted_iota(jnp.int32, (blk, blk), 1)
        _accumulate(jnp.where((row >= col)[None, :, :], s, _NEG_INF))

        l = l_scr[...]
        inv_l = pl.reciprocal(l, approx=True)      # EUP slot
        inv_l = inv_l * (2.0 - l * inv_l)          # two Newton steps -> ~f32 accuracy
        inv_l = inv_l * (2.0 - l * inv_l)
        y = (acc_scr[...] * inv_l).astype(q.dtype)          # (H, blk, hd)

        # Output projection with the head reduction fused into the accumulation:
        #   out = sum_h y[h] @ Wproj[h]
        # Each step is a standard lane-dense (blk, hd) @ (hd, C) MXU matmul; only one
        # (blk, C) f32 accumulator stays live (no (H, blk, C) intermediate).
        H = y.shape[0]
        C = wp_ref.shape[2]
        out = jnp.zeros((blk, C), jnp.float32)
        for h in range(H):                                   # static unroll over heads
            out = out + jnp.dot(y[h], wp_ref[h], preferred_element_type=jnp.float32)
        out = out + bp_ref[...].astype(jnp.float32)
        o_ref[0] = out.astype(o_ref.dtype)


# ---------------------------------------------------------------------------
# Wrapper
# ---------------------------------------------------------------------------
def causal_self_attention(x, w_qkv, b_qkv, w_proj, b_proj, *, n_head: int,
                          tile_t: int = 256, tile_rows: int = 256,
                          compute_dtype=None):
    """Inference forward of CausalSelfAttention.

    x: (B, T, C); w_qkv: (C, 3C); b_qkv: (3C,); w_proj: (C, C); b_proj: (C,).
    Weights are stored (in_features, out_features), i.e. y = x @ W + b
    (equivalent to torch's x @ W.T with W of shape (out, in)).

    tile_t=256 fills the 256-wide MXU on v6e/v7x; use 128 on v5e.
    compute_dtype=jnp.bfloat16 runs the MXU at bf16 peak (softmax state and all
    accumulators stay f32); the result is cast back to x.dtype.
    """
    B, T, C = x.shape
    H = n_head
    assert C % H == 0
    hd = C // H
    out_dtype = x.dtype

    if compute_dtype is not None:
        x = x.astype(compute_dtype)
        w_qkv = w_qkv.astype(compute_dtype)
        b_qkv = b_qkv.astype(compute_dtype)
        w_proj = w_proj.astype(compute_dtype)
        b_proj = b_proj.astype(compute_dtype)
    dtype = x.dtype

    # --- Kernel 1: QKV projection over flattened rows -----------------------
    n_rows = B * T
    tm = _pick_tile(n_rows, tile_rows)
    assert n_rows % tm == 0 and (tm % 8 == 0 or tm == n_rows)

    qkv = pl.pallas_call(
        _qkv_proj_kernel,
        out_shape=jax.ShapeDtypeStruct((n_rows, 3 * C), dtype),
        grid_spec=pltpu.PrefetchScalarGridSpec(
            num_scalar_prefetch=0,
            grid=(n_rows // tm,),
            in_specs=[
                pl.BlockSpec((tm, C), lambda i: (i, 0)),          # x rows
                pl.BlockSpec((C, 3 * C), lambda i: (0, 0)),       # W_qkv (resident)
                pl.BlockSpec((1, 3 * C), lambda i: (0, 0)),       # b_qkv
            ],
            out_specs=pl.BlockSpec((tm, 3 * C), lambda i: (i, 0)),
        ),
        compiler_params=pltpu.CompilerParams(
            dimension_semantics=("parallel",),
            vmem_limit_bytes=_VMEM_LIMIT,
        ),
    )(x.reshape(n_rows, C), w_qkv, b_qkv.reshape(1, 3 * C))

    # Layout plumbing in XLA (one-time): (B*T, 3C) -> 3 x (B, H, T, hd) head-major.
    qkv = qkv.reshape(B, T, 3, H, hd).transpose(2, 0, 3, 1, 4)
    q, k, v = qkv[0], qkv[1], qkv[2]

    # --- Kernel 2: flash attention + fused output projection ----------------
    blk = _pick_tile(T, tile_t)
    assert T % blk == 0 and (blk % 8 == 0 or blk == T)
    nq = T // blk

    # Lower-triangular (qi, ki) tile pairs; ki ascending within each qi so the
    # diagonal tile is the last (and finalizing) KV tile of each query tile.
    qi_list, ki_list = [], []
    for q_idx in range(nq):
        for k_idx in range(q_idx + 1):
            qi_list.append(q_idx)
            ki_list.append(k_idx)
    qi_tbl = jnp.asarray(qi_list, dtype=jnp.int32)
    ki_tbl = jnp.asarray(ki_list, dtype=jnp.int32)
    n_pairs = len(qi_list)

    kernel = functools.partial(_flash_attn_kernel, scale=1.0 / math.sqrt(hd), blk=blk)

    y = pl.pallas_call(
        kernel,
        out_shape=jax.ShapeDtypeStruct((B, T, C), dtype),
        grid_spec=pltpu.PrefetchScalarGridSpec(
            num_scalar_prefetch=2,                    # qi_tbl, ki_tbl -> SMEM
            grid=(B, n_pairs),
            in_specs=[
                pl.BlockSpec((1, H, blk, hd),
                             lambda b, t, qi_r, ki_r: (b, 0, qi_r[t], 0)),   # q
                pl.BlockSpec((1, H, blk, hd),
                             lambda b, t, qi_r, ki_r: (b, 0, ki_r[t], 0)),   # k
                pl.BlockSpec((1, H, blk, hd),
                             lambda b, t, qi_r, ki_r: (b, 0, ki_r[t], 0)),   # v
                pl.BlockSpec((H, hd, C),
                             lambda b, t, qi_r, ki_r: (0, 0, 0)),            # W_proj
                pl.BlockSpec((1, C),
                             lambda b, t, qi_r, ki_r: (0, 0)),               # b_proj
            ],
            out_specs=pl.BlockSpec((1, blk, C),
                                   lambda b, t, qi_r, ki_r: (b, qi_r[t], 0)),
            scratch_shapes=[
                pltpu.VMEM((H, blk, 1), jnp.float32),    # running max  m
                pltpu.VMEM((H, blk, 1), jnp.float32),    # running sum  l
                pltpu.VMEM((H, blk, hd), jnp.float32),   # output accumulator
            ],
        ),
        compiler_params=pltpu.CompilerParams(
            dimension_semantics=("parallel", "arbitrary"),
            vmem_limit_bytes=_VMEM_LIMIT,
        ),
    )(qi_tbl, ki_tbl, q, k, v, w_proj.reshape(H, hd, C), b_proj.reshape(1, C))

    return y.astype(out_dtype)


# ---------------------------------------------------------------------------
# Plain-JAX reference mirroring the PyTorch forward (inference, no dropout).
# ---------------------------------------------------------------------------
def _reference(x, w_qkv, b_qkv, w_proj, b_proj, n_head):
    B, T, C = x.shape
    hd = C // n_head
    qkv = x @ w_qkv + b_qkv
    q, k, v = jnp.split(qkv, 3, axis=-1)

    def heads(t):  # (B, T, C) -> (B, H, T, hd)
        return t.reshape(B, T, n_head, hd).transpose(0, 2, 1, 3)

    q, k, v = heads(q), heads(k), heads(v)
    att = (q @ k.transpose(0, 1, 3, 2)) / math.sqrt(hd)
    mask = jnp.tril(jnp.ones((T, T), dtype=bool))
    att = jnp.where(mask[None, None], att, -jnp.inf)
    att = jax.nn.softmax(att, axis=-1)
    y = att @ v
    y = y.transpose(0, 2, 1, 3).reshape(B, T, C)
    return y @ w_proj + b_proj


if __name__ == "__main__":
    # config: n_embd=32, n_head=4, bias=True, dropout=0.0 (inference), block_size>=T
    B, n_embd, n_head = 2, 32, 4

    key = jax.random.PRNGKey(0)
    kx, k1, k2, k3, k4 = jax.random.split(key, 5)

    w_qkv = jax.random.normal(k1, (n_embd, 3 * n_embd), dtype=jnp.float32) * 0.02
    b_qkv = jax.random.normal(k2, (3 * n_embd,), dtype=jnp.float32) * 0.02
    w_proj = jax.random.normal(k3, (n_embd, n_embd), dtype=jnp.float32) * 0.02
    b_proj = jax.random.normal(k4, (n_embd,), dtype=jnp.float32) * 0.02

    # Test 1: single tile (T=8, one (qi, ki) pair).
    T = 8
    x = jax.random.normal(kx, (B, T, n_embd), dtype=jnp.float32)
    y = jax.block_until_ready(
        causal_self_attention(x, w_qkv, b_qkv, w_proj, b_proj, n_head=n_head))
    y_ref = _reference(x, w_qkv, b_qkv, w_proj, b_proj, n_head)
    assert y.shape == (B, T, n_embd)
    assert jnp.allclose(y, y_ref, atol=1e-5, rtol=1e-5), "mismatch vs reference (T=8)"

    # Test 2: multi-tile flash path (triangular grid, off-diagonal unmasked tiles,
    # online softmax, finalize on the diagonal tile).
    T = 16
    x2 = jax.random.normal(jax.random.PRNGKey(1), (B, T, n_embd), dtype=jnp.float32)
    y2 = jax.block_until_ready(
        causal_self_attention(x2, w_qkv, b_qkv, w_proj, b_proj,
                              n_head=n_head, tile_t=8, tile_rows=8))
    y2_ref = _reference(x2, w_qkv, b_qkv, w_proj, b_proj, n_head)
    assert y2.shape == (B, T, n_embd)
    assert jnp.allclose(y2, y2_ref, atol=1e-5, rtol=1e-5), "mismatch vs reference (T=16, tiled)"

    # Test 3: bf16 operand path (MXU-peak dtype); accumulators stay f32.
    y3 = jax.block_until_ready(
        causal_self_attention(x2, w_qkv, b_qkv, w_proj, b_proj,
                              n_head=n_head, tile_t=8, tile_rows=8,
                              compute_dtype=jnp.bfloat16))
    assert y3.shape == (B, T, n_embd) and y3.dtype == x2.dtype
    assert jnp.allclose(y3, y2_ref, atol=5e-2, rtol=5e-2), "mismatch vs reference (bf16)"

    print("KERNEL_OK")
</pallas_src>

<mosaic_0001>
module attributes {stable_mosaic.version = 11 : i64} {
  func.func @_qkv_proj_kernel(%arg0: i32, %arg1: memref<16x32xf32, #tpu.memory_space<vmem>>, %arg2: memref<32x96xf32, #tpu.memory_space<vmem>>, %arg3: memref<1x96xf32, #tpu.memory_space<vmem>>, %arg4: memref<16x96xf32, #tpu.memory_space<vmem>>) attributes {dimension_semantics = [#tpu.dimension_semantics<parallel>], iteration_bounds = array<i64: 1>, scalar_prefetch = 0 : i64, scratch_operands = 0 : i64, tpu.core_type = #tpu.core_type<tc>, window_params = [{transform_indices = @transform_0, window_bounds = array<i64: 16, 32>}, {pipeline_mode = #tpu.pipeline_mode<synchronous>, transform_indices = @transform_1, window_bounds = array<i64: 32, 96>}, {pipeline_mode = #tpu.pipeline_mode<synchronous>, transform_indices = @transform_2, window_bounds = array<i64: 1, 96>}, {transform_indices = @transform_3, window_bounds = array<i64: 16, 96>}]} {
    %c0 = arith.constant 0 : index
    %c0_0 = arith.constant 0 : index
    %0 = vector.load %arg1[%c0, %c0_0] : memref<16x32xf32, #tpu.memory_space<vmem>>, vector<16x32xf32>
    %c0_1 = arith.constant 0 : index
    %c0_2 = arith.constant 0 : index
    %1 = vector.load %arg2[%c0_1, %c0_2] : memref<32x96xf32, #tpu.memory_space<vmem>>, vector<32x96xf32>
    %cst = arith.constant dense<0.000000e+00> : vector<16x96xf32>
    %2 = tpu.matmul %0, %1, %cst {dimension_numbers = #tpu.dot_dimension_numbers<[1], [0], [0], [1], [0, 0, 1, 1], [], []>} : vector<16x32xf32>, vector<32x96xf32>, vector<16x96xf32> -> vector<16x96xf32>
    %c0_3 = arith.constant 0 : index
    %c0_4 = arith.constant 0 : index
    %3 = vector.load %arg3[%c0_3, %c0_4] : memref<1x96xf32, #tpu.memory_space<vmem>>, vector<1x96xf32>
    %4 = vector.broadcast %3 : vector<1x96xf32> to vector<16x96xf32>
    %5 = arith.addf %2, %4 : vector<16x96xf32>
    %c0_5 = arith.constant 0 : index
    %c0_6 = arith.constant 0 : index
    %6 = vector.load %arg4[%c0_5, %c0_6] : memref<16x96xf32, #tpu.memory_space<vmem>>, vector<16x96xf32>
    tpu.vector_store %arg4[%c0_5, %c0_6], %5 {strides = array<i32>} : memref<16x96xf32, #tpu.memory_space<vmem>>, vector<16x96xf32>,
    return
  }
  func.func @transform_0(%arg0: i32) -> (i32, i32) {
    %c0_i32 = arith.constant 0 : i32
    %c0_i32_0 = arith.constant 0 : i32
    return %arg0, %c0_i32 : i32, i32
  }
  func.func @transform_1(%arg0: i32) -> (i32, i32) {
    %c0_i32 = arith.constant 0 : i32
    %c0_i32_0 = arith.constant 0 : i32
    %c0_i32_1 = arith.constant 0 : i32
    return %c0_i32, %c0_i32_0 : i32, i32
  }
  func.func @transform_2(%arg0: i32) -> (i32, i32) {
    %c0_i32 = arith.constant 0 : i32
    %c0_i32_0 = arith.constant 0 : i32
    %c0_i32_1 = arith.constant 0 : i32
    return %c0_i32, %c0_i32_0 : i32, i32
  }
  func.func @transform_3(%arg0: i32) -> (i32, i32) {
    %c0_i32 = arith.constant 0 : i32
    %c0_i32_0 = arith.constant 0 : i32
    return %arg0, %c0_i32 : i32, i32
  }
}

</mosaic_0001>

<llo_original>
// kernel: tpu_custom_call.1
$region0: #{tpu_custom_call.1}
  #allocation0 [shape = 'u32[]', space=smem, size = 0x4, offset = 0x4, fixed_abs, tag = 'smem constant byte address 0x4 - core index']
  #allocation1 [shape = 'u32[144,128]{1,0:T(1,128)}', space=vmem, size = 0x12000, scoped, tag = 'internal scratch']
  %s0 = inlined_call_operand.hbm [shape: f32[16,32], index: 0, kind: input, shape index: {}]
  %s1 = inlined_call_operand.hbm [shape: f32[32,96], index: 1, kind: input, shape index: {}]
  %s2 = inlined_call_operand.vmem [shape: f32[1,96], index: 2, kind: input, shape index: {}]
  %s3 = inlined_call_operand.hbm [shape: f32[16,96], index: 3, kind: output, shape index: {}]
  %s4 = sld [smem:[#allocation0]]
  $region30: #{tpu_custom_call.1} parent=0
    _
  %s6 = ssub.s32 1, %s4
  %s7 = scalar_select 0, %s6, %s4
  $region1: #{tpu_custom_call.1} parent=0
    #allocation2 [shape = 'u8[8192]{0}', space=vmem, size = 0x2000, scoped, tag = 'input window, operand 0, single buffered']
    #allocation3 [shape = 's32[1]{0}', space=sflag, size = 0x4, scoped, tag = 'scoped memory for tpu_custom_call.1']
    #allocation4 [shape = 's32[1]{0}', space=sflag, size = 0x4, scoped, tag = 'scoped memory for tpu_custom_call.1']
    #allocation5 [shape = 'u8[16384]{0}', space=vmem, size = 0x4000, scoped, tag = 'input window, operand 1, single buffered']
    #allocation6 [shape = 's32[1]{0}', space=sflag, size = 0x4, scoped, tag = 'scoped memory for tpu_custom_call.1']
    #allocation7 [shape = 'u8[8192]{0}', space=vmem, size = 0x2000, scoped, tag = 'output window, operand 0, single buffered']
    %8 = vsyncpa [#allocation3], 0
    %9 = vsyncpa [#allocation6], 0
    %10 = vsyncpa [#allocation4], 0
    // Predicated region
    $region2: #{tpu_custom_call.1} parent=1 // pred_check
      _
    $region3: #{tpu_custom_call.1} parent=1 // pred_check_branch
      %12 = sbr.rel (0) target = $region5
    $region4: #{tpu_custom_call.1} parent=1 // pred_region
      %s14 = ssub.s32 256, 256
      %15 = vsyncadd [#allocation3], %s14
      %s16 = sshll.u32 [#allocation2], 4
      %s17 = int_to_ptr.vmem [resolvable:$true] %s16
      %22 = dma.hbm_to_vmem [thread:$0]  %s0, 256, %s17, [#allocation3], 128, 128, 8
    $region5: #{tpu_custom_call.1} parent=1 // pred_fallthru
      _
    // Predicated region
    $region6: #{tpu_custom_call.1} parent=1 // pred_check
      _
    $region7: #{tpu_custom_call.1} parent=1 // pred_check_branch
      %24 = sbr.rel (0) target = $region9
    $region8: #{tpu_custom_call.1} parent=1 // pred_region
      %s26 = ssub.s32 512, 512
      %27 = vsyncadd [#allocation6], %s26
      %s28 = sshll.u32 [#allocation5], 4
      %s29 = int_to_ptr.vmem [resolvable:$true] %s28
      %34 = dma.hbm_to_vmem [thread:$0]  %s1, 512, %s29, [#allocation6], 128, 128, 8
    $region9: #{tpu_custom_call.1} parent=1 // pred_fallthru
      _
    // Predicated region
    $region10: #{tpu_custom_call.1} parent=1 // pred_check
      _
    $region11: #{tpu_custom_call.1} parent=1 // pred_check_branch
      %36 = sbr.rel (0) target = $region13
    $region12: #{tpu_custom_call.1} parent=1 // pred_region
      _
    $region13: #{tpu_custom_call.1} parent=1 // pred_fallthru
      _
    // Predicated region
    $region14: #{tpu_custom_call.1} parent=1 // pred_check
      _
    $region15: #{tpu_custom_call.1} parent=1 // pred_check_branch
      %38 = sbr.rel (0) target = $region17
    $region16: #{tpu_custom_call.1} parent=1 // pred_region
      %39 = dma.done [#allocation3], 256
    $region17: #{tpu_custom_call.1} parent=1 // pred_fallthru
      _
    // Predicated region
    $region18: #{tpu_custom_call.1} parent=1 // pred_check
      _
    $region19: #{tpu_custom_call.1} parent=1 // pred_check_branch
      %41 = sbr.rel (0) target = $region21
    $region20: #{tpu_custom_call.1} parent=1 // pred_region
      %42 = dma.done [#allocation6], 512
    $region21: #{tpu_custom_call.1} parent=1 // pred_fallthru
      _
    %v43 = vld [vmem:[#allocation2] sm:$0xff]
    %v44 = vld [vmem:[#allocation2 + $0x8] sm:$0xff]
    %v45 = vld [vmem:[#allocation5] sm:$0xff]
    %v46 = vld [vmem:[#allocation5 + $0x8] sm:$0xff]
    %v47 = vld [vmem:[#allocation5 + $0x10] sm:$0xff]
    %v48 = vld [vmem:[#allocation5 + $0x18] sm:$0xff]
    %v49 = vld [vmem:[%s2] sm:$0x1]
    %v51 = vlaneseq
    %v52 = vshrl.u32 %v51, 7
    %v53 = vsub.s32 0, %v52
    %v54 = vrot.slane %v49, %v53
    %vm56 = vcmask 261120
    %v58 = vsel %vm56, %v43, 0
    %v61 = vsel %vm56, %v44, 0
    %63 = vmatprep.subr.mxu0 0.0
    %64 = vmatpush1.msra.mxu0 %v45
    %65 = vmatprep.subr.mxu0 0.0
    %66 = vmatpush1.msra.mxu0 %v46
    %67 = vmatprep.subr.mxu0 0.0
    %68 = vmatpush1.msra.mxu0 %v47
    %69 = vmatprep.subr.mxu0 0.0
    %70 = vmatpush1.msra.mxu0 %v48
    %71 = vmatprep.subr.mxu0 0.0
    %72 = vmatpush1.msra.mxu0 0.0
    %73 = vmatprep.subr.mxu0 0.0
    %74 = vmatpush1.msra.mxu0 0.0
    %75 = vmatprep.subr.mxu0 0.0
    %76 = vmatpush1.msra.mxu0 0.0
    %77 = vmatprep.subr.mxu0 0.0
    %78 = vmatpush1.msra.mxu0 0.0
    %79 = vmatprep.subr.mxu0 0.0
    %80 = vmatpush1.msra.mxu0 0.0
    %81 = vmatprep.subr.mxu0 0.0
    %82 = vmatpush1.msra.mxu0 0.0
    %83 = vmatprep.subr.mxu0 0.0
    %84 = vmatpush1.msra.mxu0 0.0
    %85 = vmatprep.subr.mxu0 0.0
    %86 = vmatpush1.msra.mxu0 0.0
    %87 = vmatprep.subr.mxu0 0.0
    %88 = vmatpush1.msra.mxu0 0.0
    %89 = vmatprep.subr.mxu0 0.0
    %90 = vmatpush1.msra.mxu0 0.0
    %91 = vmatprep.subr.mxu0 0.0
    %92 = vmatpush1.msra.mxu0 0.0
    %93 = vmatprep.subr.mxu0 0.0
    %94 = vmatpush1.msra.mxu0 0.0
    %95 = vmatprep.subr.mxu0 0.0
    %96 = vmatpush1.msra.mxu0 0.0
    %97 = vmatprep.subr.mxu0 0.0
    %98 = vmatpush1.msra.mxu0 0.0
    %99 = vmatprep.subr.mxu0 0.0
    %100 = vmatpush1.msra.mxu0 0.0
    %101 = vmatprep.subr.mxu0 0.0
    %102 = vmatpush1.msra.mxu0 0.0
    %103 = vmatprep.subr.mxu0 0.0
    %104 = vmatpush1.msra.mxu0 0.0
    %105 = vmatprep.subr.mxu0 0.0
    %106 = vmatpush1.msra.mxu0 0.0
    %107 = vmatprep.subr.mxu0 0.0
    %108 = vmatpush1.msra.mxu0 0.0
    %109 = vmatprep.subr.mxu0 0.0
    %110 = vmatpush1.msra.mxu0 0.0
    %111 = vmatprep.subr.mxu0 0.0
    %112 = vmatpush1.msra.mxu0 0.0
    %113 = vmatprep.subr.mxu0 0.0
    %114 = vmatpush1.msra.mxu0 0.0
    %115 = vmatprep.subr.mxu0 0.0
    %116 = vmatpush1.msra.mxu0 0.0
    %117 = vmatprep.subr.mxu0 0.0
    %118 = vmatpush1.msra.mxu0 0.0
    %119 = vmatprep.subr.mxu0 0.0
    %120 = vmatpush1.msra.mxu0 0.0
    %121 = vmatprep.subr.mxu0 0.0
    %122 = vmatpush1.msra.mxu0 0.0
    %123 = vmatprep.subr.mxu0 0.0
    %124 = vmatpush1.msra.mxu0 0.0
    %125 = vmatprep.subr.mxu0 0.0
    %126 = vmatpush1.msra.mxu0 0.0
    %127 = vmatprep.mubr.f32.mxu0 0.0
    %128 = vmatmul.mubr.f32.gmra.mrb[0].mxu0 %v58
    %v129 = vpop.f32.mrb[0].mxu0
    %v130 = vadd.f32 %v54, %v129
    %v131 = vpop.f32.mrb[0].mxu0
    %132 = vmatprep.mubr.f32.mxu0 0.0
    %133 = vmatmul.mubr.f32.gmra.mrb[0].mxu0 %v61
    %v134 = vpop.f32.mrb[0].mxu0
    %v135 = vadd.f32 %v54, %v134
    %v136 = vpop.f32.mrb[0].mxu0
    %137 = vdwg.mxu0
    %vm138 = vcmask 785408
    %139 = vst.msk [vmem:[#allocation7] sm:$0xff] %vm138, %v130
    %140 = vst.msk [vmem:[#allocation7 + $0x8] sm:$0xff] %vm138, %v135
    // Predicated region
    $region22: #{tpu_custom_call.1} parent=1 // pred_check
      _
    $region23: #{tpu_custom_call.1} parent=1 // pred_check_branch
      %142 = sbr.rel (0) target = $region25
    $region24: #{tpu_custom_call.1} parent=1 // pred_region
      %s144 = ssub.s32 256, 256
      %145 = vsyncadd [#allocation4], %s144
      %s146 = sshll.u32 [#allocation7], 4
      %s147 = int_to_ptr.vmem [resolvable:$true] %s146
      %152 = dma.vmem_to_hbm [thread:$0]  %s147, 256, %s3, [#allocation4], 128, 128, 8
    $region25: #{tpu_custom_call.1} parent=1 // pred_fallthru
      _
    // Predicated region
    $region26: #{tpu_custom_call.1} parent=1 // pred_check
      _
    $region27: #{tpu_custom_call.1} parent=1 // pred_check_branch
      %154 = sbr.rel (0) target = $region29
    $region28: #{tpu_custom_call.1} parent=1 // pred_region
      %155 = dma.done [#allocation4], 256
    $region29: #{tpu_custom_call.1} parent=1 // pred_fallthru
      _
    %156 = vsyncpa [#allocation3], 1
    %157 = vsyncpa [#allocation6], 1
    %158 = vsyncpa [#allocation4], 1

</llo_original>
